<compile_context>
chip_gen: v5e
topology: v5e:2x2
jax: 0.10.0
libtpu: 0.0.40
codegen_flags: <defaults>
</compile_context>

<pallas_src>
import functools
import math

import jax
import jax.numpy as jnp
from jax.experimental import pallas as pl
from jax.experimental.pallas import tpu as pltpu

_LANE = 128               # lane width (last dim)
_MAX_BLOCK_ROWS = 4096    # 4096 x 128 x 4 B = 2 MiB per f32 block
_SCALES = (0.15, 0.2, 0.35, 0.45, 0.6)
_TWO_PI = 2.0 * math.pi


def _round_up(x: int, m: int) -> int:
    return ((x + m - 1) // m) * m


def _noise_compute_dtype():
    """bf16 Box-Muller math on chips with bf16 VPU/EUP (v6e/v7x); f32 otherwise."""
    try:
        kind = jax.devices()[0].device_kind.lower()
    except Exception:  # pragma: no cover
        return jnp.float32
    for tag in ("v2", "v3", "v4", "v5"):
        if tag in kind:
            return jnp.float32
    return jnp.bfloat16


def _speckle_prng_kernel(seed_ref, img_ref, out_ref, *, scale, compute_dtype):
    """TPU path: on-chip PRNG, dual-output Box-Muller, multiply, clamp."""
    # Distinct PRNG stream per grid block, keyed only on (seed, block index), so
    # results are deterministic regardless of which core runs which block.
    pltpu.prng_seed(seed_ref[0], pl.program_id(0))

    rows, cols = img_ref.shape
    half = rows // 2  # static; wrapper keeps block_rows even (and tile-aligned)

    # One raw 32-bit draw per output element total (both Box-Muller outputs used).
    b1 = pltpu.prng_random_bits((half, cols))
    b2 = pltpu.prng_random_bits((half, cols))

    # Mantissa bit-trick uniforms: f = bitcast(mantissa | exponent_of_1.0) in [1, 2).
    f1 = pltpu.bitcast((b1 & 0x007FFFFF) | 0x3F800000, jnp.float32)
    f2 = pltpu.bitcast((b2 & 0x007FFFFF) | 0x3F800000, jnp.float32)

    u1 = (2.0 - f1).astype(compute_dtype)          # (0, 1]  -> log(u1) is finite
    theta = f2.astype(compute_dtype) * _TWO_PI     # [2pi, 4pi); cos/sin periodic

    # Dual-output Box-Muller with the scale folded into the radius:
    #   rs = sqrt(-2*scale^2 * log(u1));  noise = 1 + rs*cos(theta) / 1 + rs*sin(theta)
    rs = jnp.sqrt(jnp.log(u1) * (-2.0 * scale * scale))
    n_top = (rs * jnp.cos(theta)).astype(jnp.float32)
    n_bot = (rs * jnp.sin(theta)).astype(jnp.float32)

    x_top = img_ref[:half, :].astype(jnp.float32)
    x_bot = img_ref[half:, :].astype(jnp.float32)
    out_ref[:half, :] = jnp.clip(x_top * (1.0 + n_top), 0.0, 1.0).astype(out_ref.dtype)
    out_ref[half:, :] = jnp.clip(x_bot * (1.0 + n_bot), 0.0, 1.0).astype(out_ref.dtype)


def _speckle_apply_kernel(img_ref, noise_ref, out_ref):
    """Fallback (non-TPU backend / interpreter): noise precomputed outside."""
    x = img_ref[...].astype(jnp.float32)
    out_ref[...] = jnp.clip(x * noise_ref[...], 0.0, 1.0).astype(out_ref.dtype)


def speckle_noise(img: jax.Array, severity: int = 3, seed: int = 0) -> jax.Array:
    """Apply speckle noise to a (C, H, W) or (B, C, H, W) float image in [0, 1]."""
    if not 0 <= severity <= 5:
        raise ValueError("Severity must be between 0 and 5.")
    if severity == 0:
        return img
    if not jnp.issubdtype(img.dtype, jnp.floating):
        raise TypeError("speckle_noise expects a floating-point image in [0, 1].")
    scale = float(_SCALES[severity - 1])

    orig_shape = img.shape
    orig_dtype = img.dtype
    n = img.size
    itemsize = jnp.dtype(orig_dtype).itemsize

    # Lane-dense (rows, 128) slab. Only pad to the next multiple of 2*128 elements
    # (rows must be even for the dual-output Box-Muller split); typical image
    # sizes (e.g. 3x224x224, power-of-two shapes) need no pad / slice copies.
    chunk = 2 * _LANE
    padded_n = _round_up(n, chunk)
    flat = img.reshape(-1)
    if padded_n != n:
        flat = jnp.pad(flat, (0, padded_n - n))
    rows = padded_n // _LANE
    x2d = flat.reshape(rows, _LANE)

    # Balanced, aligned grid blocks: all blocks are near-equal, so no step wastes
    # a full PRNG draw + transcendentals on a nearly-empty ragged block.
    # block_rows is a multiple of 2*(packed sublane rows) so each Box-Muller half
    # stays sublane-aligned (unmasked stores) for the image dtype's packing.
    row_align = 32 if itemsize <= 2 else 16
    if rows <= row_align:
        block_rows = rows                      # tiny input: single full-array block
    else:
        nb = max(1, pl.cdiv(rows, _MAX_BLOCK_ROWS))
        block_rows = _round_up(pl.cdiv(rows, nb), row_align)
        while block_rows > rows:               # keep blocks balanced for small rows
            nb += 1
            block_rows = _round_up(pl.cdiv(rows, nb), row_align)
    grid = (pl.cdiv(rows, block_rows),)

    out_sds = jax.ShapeDtypeStruct((rows, _LANE), orig_dtype)
    cost = pl.CostEstimate(
        flops=12 * padded_n,
        transcendentals=2 * padded_n,
        bytes_accessed=2 * itemsize * padded_n,
    )
    cparams = pltpu.CompilerParams(
        dimension_semantics=("parallel",),     # shard grid across TCs on megacore parts
        vmem_limit_bytes=48 * 1024 * 1024,     # <= 64 MiB physical on v7x, ample on v5e/v6e
    )

    if jax.default_backend() == "tpu":
        seed_arr = jnp.asarray([seed], dtype=jnp.int32)
        kernel = functools.partial(
            _speckle_prng_kernel, scale=scale, compute_dtype=_noise_compute_dtype()
        )
        out2d = pl.pallas_call(
            kernel,
            out_shape=out_sds,
            grid_spec=pltpu.PrefetchScalarGridSpec(
                num_scalar_prefetch=1,
                grid=grid,
                in_specs=[pl.BlockSpec((block_rows, _LANE), lambda i, seed_ref: (i, 0))],
                out_specs=pl.BlockSpec((block_rows, _LANE), lambda i, seed_ref: (i, 0)),
            ),
            compiler_params=cparams,
            cost_estimate=cost,
        )(seed_arr, x2d)
    else:
        # Non-TPU backend: TPU hardware-PRNG primitives do not lower here, so draw
        # the N(1, scale) noise with jax.random and fuse multiply+clamp in-kernel.
        key = jax.random.PRNGKey(seed)
        noise2d = 1.0 + scale * jax.random.normal(key, (rows, _LANE), dtype=jnp.float32)
        out2d = pl.pallas_call(
            _speckle_apply_kernel,
            out_shape=out_sds,
            grid=grid,
            in_specs=[
                pl.BlockSpec((block_rows, _LANE), lambda i: (i, 0)),
                pl.BlockSpec((block_rows, _LANE), lambda i: (i, 0)),
            ],
            out_specs=pl.BlockSpec((block_rows, _LANE), lambda i: (i, 0)),
            compiler_params=cparams,
            cost_estimate=cost,
        )(x2d, noise2d)

    flat_out = out2d.reshape(-1)
    if padded_n != n:
        flat_out = flat_out[:n]
    return flat_out.reshape(orig_shape)


if __name__ == "__main__":
    key = jax.random.PRNGKey(0)
    # Batched NCHW image in [0, 1]: B=2, C=4, H=W=16.
    x = jax.random.uniform(key, (2, 4, 16, 16), dtype=jnp.float32)

    y = speckle_noise(x, severity=3, seed=0)
    y = jax.block_until_ready(y)

    assert y.shape == x.shape and y.dtype == x.dtype
    assert bool(jnp.all(y >= 0.0)) and bool(jnp.all(y <= 1.0))
    assert bool(jnp.any(y != x))  # noise was actually applied
    print("KERNEL_OK")
</pallas_src>

<mosaic_0001>
module attributes {stable_mosaic.version = 11 : i64} {
  func.func @_speckle_apply_kernel(%arg0: i32, %arg1: memref<16x128xf32, #tpu.memory_space<vmem>>, %arg2: memref<16x128xf32, #tpu.memory_space<vmem>>, %arg3: memref<16x128xf32, #tpu.memory_space<vmem>>) attributes {dimension_semantics = [#tpu.dimension_semantics<parallel>], iteration_bounds = array<i64: 1>, scalar_prefetch = 0 : i64, scratch_operands = 0 : i64, tpu.core_type = #tpu.core_type<tc>, window_params = [{transform_indices = @transform_0, window_bounds = array<i64: 16, 128>}, {transform_indices = @transform_1, window_bounds = array<i64: 16, 128>}, {transform_indices = @transform_2, window_bounds = array<i64: 16, 128>}]} {
    %c0 = arith.constant 0 : index
    %c0_0 = arith.constant 0 : index
    %0 = vector.load %arg1[%c0, %c0_0] : memref<16x128xf32, #tpu.memory_space<vmem>>, vector<16x128xf32>
    %c0_1 = arith.constant 0 : index
    %c0_2 = arith.constant 0 : index
    %1 = vector.load %arg2[%c0_1, %c0_2] : memref<16x128xf32, #tpu.memory_space<vmem>>, vector<16x128xf32>
    %2 = arith.mulf %0, %1 : vector<16x128xf32>
    %cst = arith.constant 0.000000e+00 : f32
    %cst_3 = arith.constant 1.000000e+00 : f32
    %3 = vector.broadcast %cst : f32 to vector<16x128xf32>
    %4 = arith.maximumf %3, %2 : vector<16x128xf32>
    %5 = vector.broadcast %cst_3 : f32 to vector<16x128xf32>
    %6 = arith.minimumf %5, %4 : vector<16x128xf32>
    %c0_4 = arith.constant 0 : index
    %c0_5 = arith.constant 0 : index
    %7 = vector.load %arg3[%c0_4, %c0_5] : memref<16x128xf32, #tpu.memory_space<vmem>>, vector<16x128xf32>
    tpu.vector_store %arg3[%c0_4, %c0_5], %6 {strides = array<i32>} : memref<16x128xf32, #tpu.memory_space<vmem>>, vector<16x128xf32>,
    return
  }
  func.func @transform_0(%arg0: i32) -> (i32, i32) {
    %c0_i32 = arith.constant 0 : i32
    %c0_i32_0 = arith.constant 0 : i32
    return %arg0, %c0_i32 : i32, i32
  }
  func.func @transform_1(%arg0: i32) -> (i32, i32) {
    %c0_i32 = arith.constant 0 : i32
    %c0_i32_0 = arith.constant 0 : i32
    return %arg0, %c0_i32 : i32, i32
  }
  func.func @transform_2(%arg0: i32) -> (i32, i32) {
    %c0_i32 = arith.constant 0 : i32
    %c0_i32_0 = arith.constant 0 : i32
    return %arg0, %c0_i32 : i32, i32
  }
}

</mosaic_0001>

<llo_original>
// kernel: tpu_custom_call.1
$region0: #{tpu_custom_call.1}
  #allocation0 [shape = 'u32[]', space=smem, size = 0x4, offset = 0x4, fixed_abs, tag = 'smem constant byte address 0x4 - core index']
  #allocation1 [shape = 'u32[72,128]{1,0:T(1,128)}', space=vmem, size = 0x9000, scoped, tag = 'internal scratch']
  %s0 = inlined_call_operand.hbm [shape: f32[16,128], index: 0, kind: input, shape index: {}]
  %s1 = inlined_call_operand.hbm [shape: f32[16,128], index: 1, kind: input, shape index: {}]
  %s2 = inlined_call_operand.hbm [shape: f32[16,128], index: 2, kind: output, shape index: {}]
  %s3 = sld [smem:[#allocation0]]
  $region26: #{tpu_custom_call.1} parent=0
    _
  %s5 = ssub.s32 1, %s3
  %s6 = scalar_select 0, %s5, %s3
  $region1: #{tpu_custom_call.1} parent=0
    #allocation2 [shape = 'u8[8192]{0}', space=vmem, size = 0x2000, scoped, tag = 'input window, operand 0, single buffered']
    #allocation3 [shape = 's32[1]{0}', space=sflag, size = 0x4, scoped, tag = 'scoped memory for tpu_custom_call.1']
    #allocation4 [shape = 's32[1]{0}', space=sflag, size = 0x4, scoped, tag = 'scoped memory for tpu_custom_call.1']
    #allocation5 [shape = 'u8[8192]{0}', space=vmem, size = 0x2000, scoped, tag = 'input window, operand 1, single buffered']
    #allocation6 [shape = 's32[1]{0}', space=sflag, size = 0x4, scoped, tag = 'scoped memory for tpu_custom_call.1']
    #allocation7 [shape = 'u8[8192]{0}', space=vmem, size = 0x2000, scoped, tag = 'output window, operand 0, single buffered']
    %7 = vsyncpa [#allocation3], 0
    %8 = vsyncpa [#allocation6], 0
    %9 = vsyncpa [#allocation4], 0
    // Predicated region
    $region2: #{tpu_custom_call.1} parent=1 // pred_check
      _
    $region3: #{tpu_custom_call.1} parent=1 // pred_check_branch
      %11 = sbr.rel (0) target = $region5
    $region4: #{tpu_custom_call.1} parent=1 // pred_region
      %13 = vsyncadd [#allocation3], 0
      %s14 = sshll.u32 %s0, 4
      %s15 = int_to_ptr.hbm [resolvable:$true] %s14
      %s16 = sshll.u32 [#allocation2], 4
      %s17 = int_to_ptr.vmem [resolvable:$true] %s16
      %22 = dma.hbm_to_vmem [thread:$0]  %s15, 256, %s17, [#allocation3], 128, 128, 8
    $region5: #{tpu_custom_call.1} parent=1 // pred_fallthru
      _
    // Predicated region
    $region6: #{tpu_custom_call.1} parent=1 // pred_check
      _
    $region7: #{tpu_custom_call.1} parent=1 // pred_check_branch
      %24 = sbr.rel (0) target = $region9
    $region8: #{tpu_custom_call.1} parent=1 // pred_region
      %26 = vsyncadd [#allocation6], 0
      %s27 = sshll.u32 %s1, 4
      %s28 = int_to_ptr.hbm [resolvable:$true] %s27
      %s29 = sshll.u32 [#allocation5], 4
      %s30 = int_to_ptr.vmem [resolvable:$true] %s29
      %35 = dma.hbm_to_vmem [thread:$0]  %s28, 256, %s30, [#allocation6], 128, 128, 8
    $region9: #{tpu_custom_call.1} parent=1 // pred_fallthru
      _
    // Predicated region
    $region10: #{tpu_custom_call.1} parent=1 // pred_check
      _
    $region11: #{tpu_custom_call.1} parent=1 // pred_check_branch
      %37 = sbr.rel (0) target = $region13
    $region12: #{tpu_custom_call.1} parent=1 // pred_region
      %39 = dma.done [#allocation3], 256
    $region13: #{tpu_custom_call.1} parent=1 // pred_fallthru
      _
    // Predicated region
    $region14: #{tpu_custom_call.1} parent=1 // pred_check
      _
    $region15: #{tpu_custom_call.1} parent=1 // pred_check_branch
      %41 = sbr.rel (0) target = $region17
    $region16: #{tpu_custom_call.1} parent=1 // pred_region
      %43 = dma.done [#allocation6], 256
    $region17: #{tpu_custom_call.1} parent=1 // pred_fallthru
      _
    %v44 = vld [vmem:[#allocation2] sm:$0xff]
    %v45 = vld [vmem:[#allocation2 + $0x8] sm:$0xff]
    %v46 = vld [vmem:[#allocation5] sm:$0xff]
    %v47 = vld [vmem:[#allocation5 + $0x8] sm:$0xff]
    %v48 = vmul.f32 %v44, %v46
    %v49 = vmul.f32 %v45, %v47
    %v50 = vmax.f32 %v48, 0.0
    %v51 = vmax.f32 %v49, 0.0
    %v52 = vmin.f32 %v50, 1.0
    %v53 = vmin.f32 %v51, 1.0
    %54 = vst [vmem:[#allocation7] sm:$0xff] %v52
    %55 = vst [vmem:[#allocation7 + $0x8] sm:$0xff] %v53
    // Predicated region
    $region18: #{tpu_custom_call.1} parent=1 // pred_check
      _
    $region19: #{tpu_custom_call.1} parent=1 // pred_check_branch
      %57 = sbr.rel (0) target = $region21
    $region20: #{tpu_custom_call.1} parent=1 // pred_region
      %59 = vsyncadd [#allocation4], 0
      %s60 = sshll.u32 [#allocation7], 4
      %s61 = int_to_ptr.vmem [resolvable:$true] %s60
      %s62 = sshll.u32 %s2, 4
      %s63 = int_to_ptr.hbm [resolvable:$true] %s62
      %68 = dma.vmem_to_hbm [thread:$0]  %s61, 256, %s63, [#allocation4], 128, 128, 8
    $region21: #{tpu_custom_call.1} parent=1 // pred_fallthru
      _
    // Predicated region
    $region22: #{tpu_custom_call.1} parent=1 // pred_check
      _
    $region23: #{tpu_custom_call.1} parent=1 // pred_check_branch
      %70 = sbr.rel (0) target = $region25
    $region24: #{tpu_custom_call.1} parent=1 // pred_region
      %72 = dma.done [#allocation4], 256
    $region25: #{tpu_custom_call.1} parent=1 // pred_fallthru
      _
    %73 = vsyncpa [#allocation3], 1
    %74 = vsyncpa [#allocation6], 1
    %75 = vsyncpa [#allocation4], 1

</llo_original>
